<compile_context>
chip_gen: v6e
topology: v6e:2x2x1
jax: 0.10.0
libtpu: 0.0.40
codegen_flags: <defaults>
</compile_context>

<pallas_src>
import functools
import math

import jax
import jax.numpy as jnp
from jax import lax
from jax.experimental import pallas as pl
from jax.experimental.pallas import tpu as pltpu

EPS = 1e-12

_TARGET_F32_BLOCK_BYTES = 4 * 1024 * 1024   # ~4 MiB fp32 per input block
_MIN_GRID_STEPS = 4                         # >= 2 steps per TensorCore on v7x
_MAX_PACKED_LANES = 512                     # cap on k*hidden for the packed path
_VMEM_LIMIT_BYTES = 48 * 1024 * 1024        # headroom under v7x's 64 MiB VMEM


def _round_up(a, b):
    return ((a + b - 1) // b) * b


def _ln_kernel_wide(x_ref, w_ref, b_ref, o_ref):
    """k == 1 path: the whole lane axis of the block is one normalization row."""
    x = x_ref[...].astype(jnp.float32)               # (T, H)
    mean = jnp.mean(x, axis=-1, keepdims=True)       # (T, 1)
    xc = x - mean
    var = jnp.mean(xc * xc, axis=-1, keepdims=True)  # (T, 1)
    inv = lax.rsqrt(var + EPS)                       # EUP (free slot)
    o_ref[...] = (xc * (inv * w_ref[...]) + b_ref[...]).astype(o_ref.dtype)


def _ln_kernel_packed(x_ref, w_ref, b_ref, seg_ref, o_ref, *, hidden):
    """k > 1 path: k original rows packed per lane row (lane_width = k*hidden).

    Per-group (segment) mean/var are computed as a matmul against a constant
    block-diagonal ones matrix (seg), DMA'd once and held resident (constant
    index_map).  The MXU does the segmented reduce + broadcast in one shot so
    the VPU path stays lane-dense.
    """
    x = x_ref[...].astype(jnp.float32)               # (T, LW)
    seg = seg_ref[...]                               # (LW, LW) block-diagonal ones
    inv_h = 1.0 / float(hidden)
    mean = jnp.dot(x, seg, preferred_element_type=jnp.float32) * inv_h   # (T, LW)
    xc = x - mean
    var = jnp.dot(xc * xc, seg, preferred_element_type=jnp.float32) * inv_h
    inv = lax.rsqrt(var + EPS)                       # EUP
    o_ref[...] = (xc * (inv * w_ref[...]) + b_ref[...]).astype(o_ref.dtype)


def apex_fast_layer_norm(x, weight, bias):
    """LayerNorm over the last axis of `x` with affine params (weight, bias)."""
    orig_shape = x.shape
    hidden = orig_shape[-1]
    assert weight.shape == (hidden,) and bias.shape == (hidden,)

    rows = 1
    for d in orig_shape[:-1]:
        rows *= d
    x2d = x.reshape(rows, hidden)

    # Lane packing factor: pack k rows per lane row so the block's last dim is
    # a multiple of 128 (lane-dense stores), as long as k*hidden stays small.
    # For hidden a multiple of 128 this is a no-op (k = 1).
    k = 128 // math.gcd(hidden, 128)
    if k <= 1 or k * hidden > _MAX_PACKED_LANES:
        k = 1
    lane_width = k * hidden

    itemsize = jnp.dtype(x.dtype).itemsize
    sub = {4: 8, 2: 16, 1: 32}.get(itemsize, 8)      # sublane packing granularity

    # Only pad when the lane-pack reshape needs rows % k == 0 (< k extra rows).
    rows_pk = _round_up(rows, k)
    if rows_pk != rows:
        x2d = jnp.pad(x2d, ((0, rows_pk - rows), (0, 0)))
    packed_rows = rows_pk // k
    xp = x2d.reshape(packed_rows, lane_width)

    # ---- Tile sizing: ~4 MiB fp32 input block, sublane-aligned, and enough
    # grid steps for v7x's 2 TensorCores / the double-buffer pipeline. ----
    tile_rows = _TARGET_F32_BLOCK_BYTES // (lane_width * 4)
    tile_rows = max(sub, (tile_rows // sub) * sub)
    steps_cap = _round_up(max(1, pl.cdiv(packed_rows, _MIN_GRID_STEPS)), sub)
    tile_rows = min(tile_rows, steps_cap)
    tile_rows = min(tile_rows, _round_up(packed_rows, sub))
    tile_rows = max(sub, tile_rows)

    grid = (pl.cdiv(packed_rows, tile_rows),)        # boundary block masked by Pallas

    # Affine params (and the segment matrix) prepared once on the host in fp32.
    w2d = jnp.tile(weight.astype(jnp.float32).reshape(1, hidden), (1, k))
    b2d = jnp.tile(bias.astype(jnp.float32).reshape(1, hidden), (1, k))

    x_spec = pl.BlockSpec((tile_rows, lane_width), lambda i: (i, 0))
    vec_spec = pl.BlockSpec((1, lane_width), lambda i: (0, 0))

    if k == 1:
        kernel = _ln_kernel_wide
        in_specs = [x_spec, vec_spec, vec_spec]
        args = (xp, w2d, b2d)
    else:
        kernel = functools.partial(_ln_kernel_packed, hidden=hidden)
        gid = jnp.arange(lane_width) // hidden
        seg = (gid[:, None] == gid[None, :]).astype(jnp.float32)   # (LW, LW)
        seg_spec = pl.BlockSpec((lane_width, lane_width), lambda i: (0, 0))
        in_specs = [x_spec, vec_spec, vec_spec, seg_spec]
        args = (xp, w2d, b2d, seg)

    out = pl.pallas_call(
        kernel,
        out_shape=jax.ShapeDtypeStruct((packed_rows, lane_width), x.dtype),
        grid_spec=pltpu.PrefetchScalarGridSpec(
            num_scalar_prefetch=0,
            grid=grid,
            in_specs=in_specs,
            out_specs=pl.BlockSpec((tile_rows, lane_width), lambda i: (i, 0)),
        ),
        compiler_params=pltpu.CompilerParams(
            dimension_semantics=("parallel",),
            vmem_limit_bytes=_VMEM_LIMIT_BYTES,
        ),
    )(*args)

    out = out.reshape(rows_pk, hidden)
    if rows_pk != rows:
        out = out[:rows]
    return out.reshape(orig_shape)


def _reference(x, weight, bias):
    x32 = x.astype(jnp.float32)
    mean = jnp.mean(x32, axis=-1, keepdims=True)
    var = jnp.mean((x32 - mean) ** 2, axis=-1, keepdims=True)
    y = (x32 - mean) * lax.rsqrt(var + EPS)
    return (y * weight.astype(jnp.float32) + bias.astype(jnp.float32)).astype(x.dtype)


if __name__ == "__main__":
    key = jax.random.PRNGKey(0)
    k1, k2, k3, k4 = jax.random.split(key, 4)

    # Case 1: the module's demo shape (batch=2, seq=8, hidden=32) — exercises
    # the lane-packed path (k = 4, 128-wide blocks) with a partial grid block.
    batch, seq, hidden = 2, 8, 32
    x1 = jax.random.normal(k1, (batch, seq, hidden), dtype=jnp.float32)
    w1 = jnp.ones((hidden,), dtype=jnp.float32)   # FastLayerNorm init: gamma=1
    b1 = jnp.zeros((hidden,), dtype=jnp.float32)  # beta=0
    o1 = jax.block_until_ready(apex_fast_layer_norm(x1, w1, b1))
    assert jnp.allclose(o1, _reference(x1, w1, b1), atol=1e-5, rtol=1e-5), \
        "mismatch vs reference (packed path)"

    # Case 2: rows not a multiple of tile (5*20=100 rows, k=4 -> 25 packed
    # rows, grid of 4 with a masked boundary block — no host-side padding).
    x2 = jax.random.normal(k2, (5, 20, hidden), dtype=jnp.float32)
    o2 = jax.block_until_ready(apex_fast_layer_norm(x2, w1, b1))
    assert jnp.allclose(o2, _reference(x2, w1, b1), atol=1e-5, rtol=1e-5), \
        "mismatch vs reference (masked boundary block)"

    # Case 3: rows not a multiple of k (3*7=21 rows, k=4) — exercises the
    # small (<k rows) pad + trailing slice path.
    x3 = jax.random.normal(k3, (3, 7, hidden), dtype=jnp.float32)
    o3 = jax.block_until_ready(apex_fast_layer_norm(x3, w1, b1))
    assert jnp.allclose(o3, _reference(x3, w1, b1), atol=1e-5, rtol=1e-5), \
        "mismatch vs reference (k-pad path)"

    # Case 4: lane-dense hidden (multiple of 128) — exercises the k=1 path.
    hidden4 = 256
    x4 = jax.random.normal(k4, (2, 6, hidden4), dtype=jnp.float32)
    w4 = jnp.ones((hidden4,), dtype=jnp.float32)
    b4 = jnp.zeros((hidden4,), dtype=jnp.float32)
    o4 = jax.block_until_ready(apex_fast_layer_norm(x4, w4, b4))
    assert jnp.allclose(o4, _reference(x4, w4, b4), atol=1e-5, rtol=1e-5), \
        "mismatch vs reference (wide path)"

    # Case 5: hidden not a divisor/multiple of 128 (hidden=192 -> k=2,
    # 384-lane packed blocks) — exercises the generalized packing.
    hidden5 = 192
    x5 = jax.random.normal(k1, (2, 10, hidden5), dtype=jnp.float32)
    w5 = jnp.ones((hidden5,), dtype=jnp.float32)
    b5 = jnp.zeros((hidden5,), dtype=jnp.float32)
    o5 = jax.block_until_ready(apex_fast_layer_norm(x5, w5, b5))
    assert jnp.allclose(o5, _reference(x5, w5, b5), atol=1e-5, rtol=1e-5), \
        "mismatch vs reference (generalized packing)"

    print("KERNEL_OK")
</pallas_src>

<mosaic_0001>
module attributes {stable_mosaic.version = 11 : i64} {
  func.func @_ln_kernel_packed(%arg0: i32, %arg1: memref<8x128xf32, #tpu.memory_space<vmem>>, %arg2: memref<1x128xf32, #tpu.memory_space<vmem>>, %arg3: memref<1x128xf32, #tpu.memory_space<vmem>>, %arg4: memref<128x128xf32, #tpu.memory_space<vmem>>, %arg5: memref<8x128xf32, #tpu.memory_space<vmem>>) attributes {dimension_semantics = [#tpu.dimension_semantics<parallel>], iteration_bounds = array<i64: 1>, scalar_prefetch = 0 : i64, scratch_operands = 0 : i64, tpu.core_type = #tpu.core_type<tc>, window_params = [{transform_indices = @transform_0, window_bounds = array<i64: 8, 128>}, {pipeline_mode = #tpu.pipeline_mode<synchronous>, transform_indices = @transform_1, window_bounds = array<i64: 1, 128>}, {pipeline_mode = #tpu.pipeline_mode<synchronous>, transform_indices = @transform_2, window_bounds = array<i64: 1, 128>}, {pipeline_mode = #tpu.pipeline_mode<synchronous>, transform_indices = @transform_3, window_bounds = array<i64: 128, 128>}, {transform_indices = @transform_4, window_bounds = array<i64: 8, 128>}]} {
    %c0 = arith.constant 0 : index
    %c0_0 = arith.constant 0 : index
    %0 = vector.load %arg1[%c0, %c0_0] : memref<8x128xf32, #tpu.memory_space<vmem>>, vector<8x128xf32>
    %c0_1 = arith.constant 0 : index
    %c0_2 = arith.constant 0 : index
    %1 = vector.load %arg4[%c0_1, %c0_2] : memref<128x128xf32, #tpu.memory_space<vmem>>, vector<128x128xf32>
    %cst = arith.constant dense<0.000000e+00> : vector<8x128xf32>
    %2 = tpu.matmul %0, %1, %cst {dimension_numbers = #tpu.dot_dimension_numbers<[1], [0], [0], [1], [0, 0, 1, 1], [], []>} : vector<8x128xf32>, vector<128x128xf32>, vector<8x128xf32> -> vector<8x128xf32>
    %cst_3 = arith.constant 3.125000e-02 : f32
    %3 = vector.broadcast %cst_3 : f32 to vector<8x128xf32>
    %4 = arith.mulf %2, %3 : vector<8x128xf32>
    %5 = arith.subf %0, %4 : vector<8x128xf32>
    %6 = arith.mulf %5, %5 : vector<8x128xf32>
    %cst_4 = arith.constant dense<0.000000e+00> : vector<8x128xf32>
    %7 = tpu.matmul %6, %1, %cst_4 {dimension_numbers = #tpu.dot_dimension_numbers<[1], [0], [0], [1], [0, 0, 1, 1], [], []>} : vector<8x128xf32>, vector<128x128xf32>, vector<8x128xf32> -> vector<8x128xf32>
    %cst_5 = arith.constant 3.125000e-02 : f32
    %8 = vector.broadcast %cst_5 : f32 to vector<8x128xf32>
    %9 = arith.mulf %7, %8 : vector<8x128xf32>
    %cst_6 = arith.constant 9.99999996E-13 : f32
    %10 = vector.broadcast %cst_6 : f32 to vector<8x128xf32>
    %11 = arith.addf %9, %10 : vector<8x128xf32>
    %12 = math.rsqrt %11 : vector<8x128xf32>
    %c0_7 = arith.constant 0 : index
    %c0_8 = arith.constant 0 : index
    %13 = vector.load %arg2[%c0_7, %c0_8] : memref<1x128xf32, #tpu.memory_space<vmem>>, vector<1x128xf32>
    %14 = vector.broadcast %13 : vector<1x128xf32> to vector<8x128xf32>
    %15 = arith.mulf %12, %14 : vector<8x128xf32>
    %16 = arith.mulf %5, %15 : vector<8x128xf32>
    %c0_9 = arith.constant 0 : index
    %c0_10 = arith.constant 0 : index
    %17 = vector.load %arg3[%c0_9, %c0_10] : memref<1x128xf32, #tpu.memory_space<vmem>>, vector<1x128xf32>
    %18 = vector.broadcast %17 : vector<1x128xf32> to vector<8x128xf32>
    %19 = arith.addf %16, %18 : vector<8x128xf32>
    %c0_11 = arith.constant 0 : index
    %c0_12 = arith.constant 0 : index
    %20 = vector.load %arg5[%c0_11, %c0_12] : memref<8x128xf32, #tpu.memory_space<vmem>>, vector<8x128xf32>
    tpu.vector_store %arg5[%c0_11, %c0_12], %19 {strides = array<i32>} : memref<8x128xf32, #tpu.memory_space<vmem>>, vector<8x128xf32>,
    return
  }
  func.func @transform_0(%arg0: i32) -> (i32, i32) {
    %c0_i32 = arith.constant 0 : i32
    %c0_i32_0 = arith.constant 0 : i32
    return %arg0, %c0_i32 : i32, i32
  }
  func.func @transform_1(%arg0: i32) -> (i32, i32) {
    %c0_i32 = arith.constant 0 : i32
    %c0_i32_0 = arith.constant 0 : i32
    %c0_i32_1 = arith.constant 0 : i32
    return %c0_i32, %c0_i32_0 : i32, i32
  }
  func.func @transform_2(%arg0: i32) -> (i32, i32) {
    %c0_i32 = arith.constant 0 : i32
    %c0_i32_0 = arith.constant 0 : i32
    %c0_i32_1 = arith.constant 0 : i32
    return %c0_i32, %c0_i32_0 : i32, i32
  }
  func.func @transform_3(%arg0: i32) -> (i32, i32) {
    %c0_i32 = arith.constant 0 : i32
    %c0_i32_0 = arith.constant 0 : i32
    %c0_i32_1 = arith.constant 0 : i32
    return %c0_i32, %c0_i32_0 : i32, i32
  }
  func.func @transform_4(%arg0: i32) -> (i32, i32) {
    %c0_i32 = arith.constant 0 : i32
    %c0_i32_0 = arith.constant 0 : i32
    return %arg0, %c0_i32 : i32, i32
  }
}

</mosaic_0001>

<llo_original>
// kernel: tpu_custom_call.1
$region0: #{tpu_custom_call.1}
  #allocation0 [shape = 'u32[]', space=smem, size = 0x4, offset = 0x4, fixed_abs, tag = 'smem constant byte address 0x4 - core index']
  #allocation1 [shape = 'u32[144,128]{1,0:T(1,128)}', space=vmem, size = 0x12000, scoped, tag = 'internal scratch']
  %s0 = inlined_call_operand.hbm [shape: f32[4,128], index: 0, kind: input, shape index: {}]
  %s1 = inlined_call_operand.vmem [shape: f32[1,128], index: 1, kind: input, shape index: {}]
  %s2 = inlined_call_operand.vmem [shape: f32[1,128], index: 2, kind: input, shape index: {}]
  %s3 = inlined_call_operand.hbm [shape: f32[128,128], index: 3, kind: input, shape index: {}]
  %s4 = inlined_call_operand.hbm [shape: f32[4,128], index: 4, kind: output, shape index: {}]
  %s5 = sld [smem:[#allocation0]]
  $region34: #{tpu_custom_call.1} parent=0
    _
  %s7 = ssub.s32 1, %s5
  %s8 = scalar_select 0, %s7, %s5
  $region1: #{tpu_custom_call.1} parent=0
    #allocation2 [shape = 'u8[4096]{0}', space=vmem, size = 0x1000, scoped, tag = 'input window, operand 0, single buffered']
    #allocation3 [shape = 's32[1]{0}', space=sflag, size = 0x4, scoped, tag = 'scoped memory for tpu_custom_call.1']
    #allocation4 [shape = 's32[1]{0}', space=sflag, size = 0x4, scoped, tag = 'scoped memory for tpu_custom_call.1']
    #allocation5 [shape = 'u8[65536]{0}', space=vmem, size = 0x10000, scoped, tag = 'input window, operand 3, single buffered']
    #allocation6 [shape = 's32[1]{0}', space=sflag, size = 0x4, scoped, tag = 'scoped memory for tpu_custom_call.1']
    #allocation7 [shape = 'u8[4096]{0}', space=vmem, size = 0x1000, scoped, tag = 'output window, operand 0, single buffered']
    %9 = vsyncpa [#allocation3], 0
    %10 = vsyncpa [#allocation6], 0
    %11 = vsyncpa [#allocation4], 0
    // Predicated region
    $region2: #{tpu_custom_call.1} parent=1 // pred_check
      _
    $region3: #{tpu_custom_call.1} parent=1 // pred_check_branch
      %13 = sbr.rel (0) target = $region5
    $region4: #{tpu_custom_call.1} parent=1 // pred_region
      %s15 = ssub.s32 128, 64
      %16 = vsyncadd [#allocation3], %s15
      %s17 = sshll.u32 [#allocation2], 4
      %s18 = int_to_ptr.vmem [resolvable:$true] %s17
      %23 = dma.hbm_to_vmem [thread:$0]  %s0, 64, %s18, [#allocation3], 64, 64, 4
    $region5: #{tpu_custom_call.1} parent=1 // pred_fallthru
      _
    // Predicated region
    $region6: #{tpu_custom_call.1} parent=1 // pred_check
      _
    $region7: #{tpu_custom_call.1} parent=1 // pred_check_branch
      %25 = sbr.rel (0) target = $region9
    $region8: #{tpu_custom_call.1} parent=1 // pred_region
      _
    $region9: #{tpu_custom_call.1} parent=1 // pred_fallthru
      _
    // Predicated region
    $region10: #{tpu_custom_call.1} parent=1 // pred_check
      _
    $region11: #{tpu_custom_call.1} parent=1 // pred_check_branch
      %27 = sbr.rel (0) target = $region13
    $region12: #{tpu_custom_call.1} parent=1 // pred_region
      _
    $region13: #{tpu_custom_call.1} parent=1 // pred_fallthru
      _
    // Predicated region
    $region14: #{tpu_custom_call.1} parent=1 // pred_check
      _
    $region15: #{tpu_custom_call.1} parent=1 // pred_check_branch
      %29 = sbr.rel (0) target = $region17
    $region16: #{tpu_custom_call.1} parent=1 // pred_region
      %s31 = ssub.s32 2048, 2048
      %32 = vsyncadd [#allocation6], %s31
      %s33 = sshll.u32 [#allocation5], 4
      %s34 = int_to_ptr.vmem [resolvable:$true] %s33
      %39 = dma.hbm_to_vmem [thread:$0]  %s3, 2048, %s34, [#allocation6], 128, 128, 8
    $region17: #{tpu_custom_call.1} parent=1 // pred_fallthru
      _
    // Predicated region
    $region18: #{tpu_custom_call.1} parent=1 // pred_check
      _
    $region19: #{tpu_custom_call.1} parent=1 // pred_check_branch
      %41 = sbr.rel (0) target = $region21
    $region20: #{tpu_custom_call.1} parent=1 // pred_region
      %42 = dma.done [#allocation3], 128
    $region21: #{tpu_custom_call.1} parent=1 // pred_fallthru
      _
    // Predicated region
    $region22: #{tpu_custom_call.1} parent=1 // pred_check
      _
    $region23: #{tpu_custom_call.1} parent=1 // pred_check_branch
      %44 = sbr.rel (0) target = $region25
    $region24: #{tpu_custom_call.1} parent=1 // pred_region
      %45 = dma.done [#allocation6], 2048
    $region25: #{tpu_custom_call.1} parent=1 // pred_fallthru
      _
    %v46 = vld [vmem:[#allocation2] sm:$0xff]
    %v47 = vld [vmem:[#allocation5] sm:$0xff]
    %v48 = vld [vmem:[#allocation5 + $0x8] sm:$0xff]
    %v49 = vld [vmem:[#allocation5 + $0x10] sm:$0xff]
    %v50 = vld [vmem:[#allocation5 + $0x18] sm:$0xff]
    %v51 = vld [vmem:[#allocation5 + $0x20] sm:$0xff]
    %v52 = vld [vmem:[#allocation5 + $0x28] sm:$0xff]
    %v53 = vld [vmem:[#allocation5 + $0x30] sm:$0xff]
    %v54 = vld [vmem:[#allocation5 + $0x38] sm:$0xff]
    %v55 = vld [vmem:[#allocation5 + $0x40] sm:$0xff]
    %v56 = vld [vmem:[#allocation5 + $0x48] sm:$0xff]
    %v57 = vld [vmem:[#allocation5 + $0x50] sm:$0xff]
    %v58 = vld [vmem:[#allocation5 + $0x58] sm:$0xff]
    %v59 = vld [vmem:[#allocation5 + $0x60] sm:$0xff]
    %v60 = vld [vmem:[#allocation5 + $0x68] sm:$0xff]
    %v61 = vld [vmem:[#allocation5 + $0x70] sm:$0xff]
    %v62 = vld [vmem:[#allocation5 + $0x78] sm:$0xff]
    %63 = vmatprep.subr.mxu0 0.0
    %64 = vmatpush1.msra.mxu0 %v62
    %65 = vmatprep.subr.mxu0 0.0
    %66 = vmatpush1.msra.mxu0 %v61
    %67 = vmatprep.subr.mxu0 0.0
    %68 = vmatpush1.msra.mxu0 %v60
    %69 = vmatprep.subr.mxu0 0.0
    %70 = vmatpush1.msra.mxu0 %v59
    %71 = vmatprep.subr.mxu0 0.0
    %72 = vmatpush1.msra.mxu0 %v58
    %73 = vmatprep.subr.mxu0 0.0
    %74 = vmatpush1.msra.mxu0 %v57
    %75 = vmatprep.subr.mxu0 0.0
    %76 = vmatpush1.msra.mxu0 %v56
    %77 = vmatprep.subr.mxu0 0.0
    %78 = vmatpush1.msra.mxu0 %v55
    %79 = vmatprep.subr.mxu0 0.0
    %80 = vmatpush1.msra.mxu0 %v54
    %81 = vmatprep.subr.mxu0 0.0
    %82 = vmatpush1.msra.mxu0 %v53
    %83 = vmatprep.subr.mxu0 0.0
    %84 = vmatpush1.msra.mxu0 %v52
    %85 = vmatprep.subr.mxu0 0.0
    %86 = vmatpush1.msra.mxu0 %v51
    %87 = vmatprep.subr.mxu0 0.0
    %88 = vmatpush1.msra.mxu0 %v50
    %89 = vmatprep.subr.mxu0 0.0
    %90 = vmatpush1.msra.mxu0 %v49
    %91 = vmatprep.subr.mxu0 0.0
    %92 = vmatpush1.msra.mxu0 %v48
    %93 = vmatprep.subr.mxu0 0.0
    %94 = vmatpush1.msra.mxu0 %v47
    %95 = vmatprep.subr.mxu0 0.0
    %96 = vmatpush2.msra.mxu0 0.0
    %97 = vmatprep.subr.mxu0 0.0
    %98 = vmatpush2.msra.mxu0 0.0
    %99 = vmatprep.subr.mxu0 0.0
    %100 = vmatpush2.msra.mxu0 0.0
    %101 = vmatprep.subr.mxu0 0.0
    %102 = vmatpush2.msra.mxu0 0.0
    %103 = vmatprep.subr.mxu0 0.0
    %104 = vmatpush2.msra.mxu0 0.0
    %105 = vmatprep.subr.mxu0 0.0
    %106 = vmatpush2.msra.mxu0 0.0
    %107 = vmatprep.subr.mxu0 0.0
    %108 = vmatpush2.msra.mxu0 0.0
    %109 = vmatprep.subr.mxu0 0.0
    %110 = vmatpush2.msra.mxu0 0.0
    %111 = vmatprep.subr.mxu0 0.0
    %112 = vmatpush2.msra.mxu0 0.0
    %113 = vmatprep.subr.mxu0 0.0
    %114 = vmatpush2.msra.mxu0 0.0
    %115 = vmatprep.subr.mxu0 0.0
    %116 = vmatpush2.msra.mxu0 0.0
    %117 = vmatprep.subr.mxu0 0.0
    %118 = vmatpush2.msra.mxu0 0.0
    %119 = vmatprep.subr.mxu0 0.0
    %120 = vmatpush2.msra.mxu0 0.0
    %121 = vmatprep.subr.mxu0 0.0
    %122 = vmatpush2.msra.mxu0 0.0
    %123 = vmatprep.subr.mxu0 0.0
    %124 = vmatpush2.msra.mxu0 0.0
    %125 = vmatprep.subr.mxu0 0.0
    %126 = vmatpush2.msra.mxu0 0.0
    %127 = vmatprep.mubr.f32.mxu0 0.0
    %128 = vmatmul.mubr.f32.gmra.mxu0 %v46
    %v129 = vpop.f32.mrf.mxu0
    %v130 = vadd.f32 0.0, %v129
    %v131 = vpop.f32.mrf.mxu0
    %132 = vdwg.mxu0
    %v133 = vmul.f32 %v130, 0.03125
    %v134 = vsub.f32 %v46, %v133
    %v135 = vmul.f32 %v134, %v134
    %136 = vmatprep.subr.mxu0 0.0
    %137 = vmatpush1.msra.mxu0 %v62
    %138 = vmatprep.subr.mxu0 0.0
    %139 = vmatpush1.msra.mxu0 %v61
    %140 = vmatprep.subr.mxu0 0.0
    %141 = vmatpush1.msra.mxu0 %v60
    %142 = vmatprep.subr.mxu0 0.0
    %143 = vmatpush1.msra.mxu0 %v59
    %144 = vmatprep.subr.mxu0 0.0
    %145 = vmatpush1.msra.mxu0 %v58
    %146 = vmatprep.subr.mxu0 0.0
    %147 = vmatpush1.msra.mxu0 %v57
    %148 = vmatprep.subr.mxu0 0.0
    %149 = vmatpush1.msra.mxu0 %v56
    %150 = vmatprep.subr.mxu0 0.0
    %151 = vmatpush1.msra.mxu0 %v55
    %152 = vmatprep.subr.mxu0 0.0
    %153 = vmatpush1.msra.mxu0 %v54
    %154 = vmatprep.subr.mxu0 0.0
    %155 = vmatpush1.msra.mxu0 %v53
    %156 = vmatprep.subr.mxu0 0.0
    %157 = vmatpush1.msra.mxu0 %v52
    %158 = vmatprep.subr.mxu0 0.0
    %159 = vmatpush1.msra.mxu0 %v51
    %160 = vmatprep.subr.mxu0 0.0
    %161 = vmatpush1.msra.mxu0 %v50
    %162 = vmatprep.subr.mxu0 0.0
    %163 = vmatpush1.msra.mxu0 %v49
    %164 = vmatprep.subr.mxu0 0.0
    %165 = vmatpush1.msra.mxu0 %v48
    %166 = vmatprep.subr.mxu0 0.0
    %167 = vmatpush1.msra.mxu0 %v47
    %168 = vmatprep.subr.mxu0 0.0
    %169 = vmatpush2.msra.mxu0 0.0
    %170 = vmatprep.subr.mxu0 0.0
    %171 = vmatpush2.msra.mxu0 0.0
    %172 = vmatprep.subr.mxu0 0.0
    %173 = vmatpush2.msra.mxu0 0.0
    %174 = vmatprep.subr.mxu0 0.0
    %175 = vmatpush2.msra.mxu0 0.0
    %176 = vmatprep.subr.mxu0 0.0
    %177 = vmatpush2.msra.mxu0 0.0
    %178 = vmatprep.subr.mxu0 0.0
    %179 = vmatpush2.msra.mxu0 0.0
    %180 = vmatprep.subr.mxu0 0.0
    %181 = vmatpush2.msra.mxu0 0.0
    %182 = vmatprep.subr.mxu0 0.0
    %183 = vmatpush2.msra.mxu0 0.0
    %184 = vmatprep.subr.mxu0 0.0
    %185 = vmatpush2.msra.mxu0 0.0
    %186 = vmatprep.subr.mxu0 0.0
    %187 = vmatpush2.msra.mxu0 0.0
    %188 = vmatprep.subr.mxu0 0.0
    %189 = vmatpush2.msra.mxu0 0.0
    %190 = vmatprep.subr.mxu0 0.0
    %191 = vmatpush2.msra.mxu0 0.0
    %192 = vmatprep.subr.mxu0 0.0
    %193 = vmatpush2.msra.mxu0 0.0
    %194 = vmatprep.subr.mxu0 0.0
    %195 = vmatpush2.msra.mxu0 0.0
    %196 = vmatprep.subr.mxu0 0.0
    %197 = vmatpush2.msra.mxu0 0.0
    %198 = vmatprep.subr.mxu0 0.0
    %199 = vmatpush2.msra.mxu0 0.0
    %200 = vmatprep.mubr.f32.mxu0 0.0
    %201 = vmatmul.mubr.f32.gmra.mxu0 %v135
    %v202 = vpop.f32.mrf.mxu0
    %v203 = vadd.f32 0.0, %v202
    %v204 = vpop.f32.mrf.mxu0
    %205 = vdwg.mxu0
    %v206 = vmul.f32 %v203, 0.03125
    %v207 = vadd.f32 %v206, 1e-12
    %v208 = vrsqrt.pop %v207
    %v209 = vld [vmem:[%s1] sm:$0x1]
    %v211 = vlaneseq
    %v212 = vshrl.u32 %v211, 7
    %v213 = vsub.s32 0, %v212
    %v214 = vrot.slane %v209, %v213
    %v216 = vmul.f32 %v208, %v214
    %v217 = vmul.f32 %v134, %v216
    %v218 = vld [vmem:[%s2] sm:$0x1]
    %v220 = vlaneseq
    %v221 = vshrl.u32 %v220, 7
    %v222 = vsub.s32 0, %v221
    %v223 = vrot.slane %v218, %v222
    %v225 = vadd.f32 %v217, %v223
    %226 = vst [vmem:[#allocation7] sm:$0xff] %v225
    // Predicated region
    $region26: #{tpu_custom_call.1} parent=1 // pred_check
      _
    $region27: #{tpu_custom_call.1} parent=1 // pred_check_branch
      %228 = sbr.rel (0) target = $region29
    $region28: #{tpu_custom_call.1} parent=1 // pred_region
      %s230 = ssub.s32 128, 64
      %231 = vsyncadd [#allocation4], %s230
      %s232 = sshll.u32 [#allocation7], 4
      %s233 = int_to_ptr.vmem [resolvable:$true] %s232
      %238 = dma.vmem_to_hbm [thread:$0]  %s233, 64, %s4, [#allocation4], 64, 64, 4
    $region29: #{tpu_custom_call.1} parent=1 // pred_fallthru
      _
    // Predicated region
    $region30: #{tpu_custom_call.1} parent=1 // pred_check
      _
    $region31: #{tpu_custom_call.1} parent=1 // pred_check_branch
      %240 = sbr.rel (0) target = $region33
    $region32: #{tpu_custom_call.1} parent=1 // pred_region
      %241 = dma.done [#allocation4], 128
    $region33: #{tpu_custom_call.1} parent=1 // pred_fallthru
      _
    %242 = vsyncpa [#allocation3], 1
    %243 = vsyncpa [#allocation6], 1
    %244 = vsyncpa [#allocation4], 1

</llo_original>
